<compile_context>
chip_gen: v7x
topology: tpu7x:2x2x1
jax: 0.10.0
libtpu: 0.0.40
codegen_flags: <defaults>
</compile_context>

<pallas_src>
import functools

import jax
import jax.numpy as jnp
from jax.experimental import pallas as pl
from jax.experimental.pallas import tpu as pltpu


_DEFAULT_RESIDENT_BYTES = 2 * 1024 * 1024   # fast path: whole working set resident in VMEM
_DEFAULT_BLOCK_BYTES = 2 * 1024 * 1024      # streaming path: bytes per input block
_VMEM_LIMIT_BYTES = 32 * 1024 * 1024        # raise v5e's 16 MiB default; safe on v6e/v7x


# =============================================================================
# Kernels: is_special = False  (per-frequency mean over batch & time)
# =============================================================================
def _freq_fast_kernel(x_ref, o_ref, *, eps, inv_count):
    """Whole array resident in VMEM: one HBM read, one HBM write."""
    xf = x_ref[...].astype(jnp.float32)                    # [B, F, T]
    s = jnp.sum(xf, axis=0)                                # [F, T]  (VPU adds over batch)
    mean = jnp.sum(s, axis=1, keepdims=True) * inv_count   # [F, 1]  (one cross-lane reduce)
    inv = 1.0 / (mean + eps)                               # exact reciprocal of a tiny vector
    o_ref[...] = (xf * inv[None, :, :]).astype(o_ref.dtype)


def _freq_fused_kernel(x_ref, o_ref, inv_ref, *, eps, inv_count):
    """Fused streaming kernel, grid = (freq blocks, phase, time blocks).

    phase 0: reduce this freq block's sum over (batch, time) into inv_ref and
             convert it to 1/(mean+eps) on the last time block.
    phase 1: broadcast-multiply every (batch, freq-block, time-block) tile.
    """
    p = pl.program_id(1)
    t = pl.program_id(2)

    @pl.when(p == 0)
    def _reduce():
        @pl.when(t == 0)
        def _init():
            inv_ref[...] = jnp.zeros_like(inv_ref)

        xf = x_ref[...].astype(jnp.float32)                 # [B, Ff, Tc]
        s = jnp.sum(xf, axis=0)                             # [Ff, Tc]  (VPU adds)
        inv_ref[...] += jnp.sum(s, axis=1, keepdims=True)   # [Ff, 1]   (one XLU reduce / tile)

        @pl.when(t == pl.num_programs(2) - 1)
        def _finalize():
            inv_ref[...] = 1.0 / (inv_ref[...] * inv_count + eps)

    @pl.when(p == 1)
    def _normalize():
        xf = x_ref[...].astype(jnp.float32)
        o_ref[...] = (xf * inv_ref[...][None, :, :]).astype(o_ref.dtype)


# =============================================================================
# Kernels: is_special = True  (per-batch mean over freq & time)
# =============================================================================
def _special_fast_kernel(x_ref, o_ref, *, eps, inv_count):
    """One batch element resident per grid step.  The [B,F,T]->[F,B,T]
    permutation lives entirely in the BlockSpec index maps, so the kernel body
    is a pure VPU reduce + broadcast multiply on [F, T] tiles."""
    xf = x_ref[...].astype(jnp.float32)                        # [F, T]
    mean = jnp.sum(xf, axis=(0, 1), keepdims=True) * inv_count  # (1, 1)
    inv = 1.0 / (mean + eps)
    o_ref[...] = (xf * inv).astype(o_ref.dtype)


def _special_fused_kernel(x_ref, o_ref, inv_ref, *, eps, inv_count):
    """Fused streaming kernel, grid = (batch, phase, time blocks).  Each batch
    element has an independent mean, so the batch axis is fully parallel."""
    p = pl.program_id(1)
    t = pl.program_id(2)

    @pl.when(p == 0)
    def _reduce():
        @pl.when(t == 0)
        def _init():
            inv_ref[...] = jnp.zeros_like(inv_ref)

        xf = x_ref[...].astype(jnp.float32)                  # [F, Tc]
        inv_ref[...] += jnp.sum(xf, axis=(0, 1), keepdims=True)

        @pl.when(t == pl.num_programs(2) - 1)
        def _finalize():
            inv_ref[...] = 1.0 / (inv_ref[...] * inv_count + eps)

    @pl.when(p == 1)
    def _normalize():
        xf = x_ref[...].astype(jnp.float32)
        o_ref[...] = (xf * inv_ref[...]).astype(o_ref.dtype)


# =============================================================================
# Wrapper helpers
# =============================================================================
def _compiler_params(semantics):
    return pltpu.CompilerParams(dimension_semantics=semantics,
                                vmem_limit_bytes=_VMEM_LIMIT_BYTES)


def _pad_time(x, T):
    """Zero-pad the time axis to a multiple of 128 (lane-dense tiles).  Padded
    zeros do not perturb the sums; the true element count is used for the mean
    and the padding is sliced off afterwards."""
    if T % 128 == 0:
        return x, T
    T_eff = ((T + 127) // 128) * 128
    return jnp.pad(x, ((0, 0), (0, 0), (0, T_eff - T))), T_eff


def _choose_freq_blocks(B, F, T_eff, itemsize, budget):
    """(freq_block, time_block) for the streaming freq path, VMEM-budget aware."""
    for tc in (1024, 512, 256, 128):
        if T_eff % tc == 0 and B * F * tc * itemsize <= budget:
            return F, tc
    tc = 128
    if F % 8 == 0:
        for ff in range(F - 8, 0, -8):   # largest multiple-of-8 divisor that fits
            if F % ff == 0 and B * ff * tc * itemsize <= budget:
                return ff, tc
    # TODO(synk): block the batch dim as well for very large B*F (not needed here).
    return F, tc


def _choose_special_time_block(F, T_eff, itemsize, budget):
    for tc in (1024, 512, 256, 128):
        if T_eff % tc == 0 and F * tc * itemsize <= budget:
            return tc
    # TODO(synk): block the freq dim too for extremely wide spectrograms.
    return 128


# =============================================================================
# Forward paths
# =============================================================================
def _forward_freq(x, eps, max_resident_bytes, block_budget_bytes):
    B, F, T = x.shape
    dtype = x.dtype
    itemsize = dtype.itemsize
    inv_count = 1.0 / float(B * T)

    if B * F * T * itemsize <= max_resident_bytes:
        # ---- fully VMEM-resident fast path: 1 HBM read + 1 HBM write ----
        return pl.pallas_call(
            functools.partial(_freq_fast_kernel, eps=eps, inv_count=inv_count),
            out_shape=jax.ShapeDtypeStruct((B, F, T), dtype),
            grid_spec=pltpu.PrefetchScalarGridSpec(
                num_scalar_prefetch=0,
                grid=(1,),
                in_specs=[pl.BlockSpec((B, F, T), lambda i: (0, 0, 0))],
                out_specs=pl.BlockSpec((B, F, T), lambda i: (0, 0, 0)),
            ),
            compiler_params=_compiler_params(("arbitrary",)),
        )(x)

    # ---- fused streaming path: phase 0 reduce, phase 1 normalize (2R + 1W) ----
    x_work, T_eff = _pad_time(x, T)
    Ff, Tc = _choose_freq_blocks(B, F, T_eff, itemsize, block_budget_bytes)
    nf, nt = F // Ff, T_eff // Tc

    out = pl.pallas_call(
        functools.partial(_freq_fused_kernel, eps=eps, inv_count=inv_count),
        out_shape=jax.ShapeDtypeStruct((B, F, T_eff), dtype),
        grid_spec=pltpu.PrefetchScalarGridSpec(
            num_scalar_prefetch=0,
            # (freq blocks [parallel, independent means], phase, time blocks)
            grid=(nf, 2, nt),
            in_specs=[pl.BlockSpec((B, Ff, Tc), lambda f, p, t: (0, f, t))],
            # Freeze the output block at (0, f, 0) during the reduction phase so the
            # not-yet-written buffer is never flushed to HBM; phase 1 then streams
            # each output block exactly once (writes stay at 1x).
            out_specs=pl.BlockSpec((B, Ff, Tc), lambda f, p, t: (0, f, t * p)),
            scratch_shapes=[pltpu.VMEM((Ff, 1), jnp.float32)],
        ),
        compiler_params=_compiler_params(("parallel", "arbitrary", "arbitrary")),
    )(x_work)
    return out if T_eff == T else out[:, :, :T]


def _forward_special(x, eps, max_resident_bytes, block_budget_bytes):
    B, F, T = x.shape
    dtype = x.dtype
    itemsize = dtype.itemsize
    inv_count = 1.0 / float(F * T)

    if F * T * itemsize <= max_resident_bytes:
        # ---- per-batch resident fast path: 1 HBM read + 1 HBM write ----
        out = pl.pallas_call(
            functools.partial(_special_fast_kernel, eps=eps, inv_count=inv_count),
            out_shape=jax.ShapeDtypeStruct((F, B, T), dtype),
            grid_spec=pltpu.PrefetchScalarGridSpec(
                num_scalar_prefetch=0,
                grid=(B,),
                in_specs=[pl.BlockSpec((None, F, T), lambda b: (b, 0, 0))],
                # [B,F,T] -> [F,B,T] permutation folded into the output DMA addressing.
                out_specs=pl.BlockSpec((F, None, T), lambda b: (0, b, 0)),
            ),
            compiler_params=_compiler_params(("parallel",)),
        )(x)
        return out.reshape(F * B, 1, T)

    # ---- fused streaming path (2R + 1W), batch axis fully parallel ----
    x_work, T_eff = _pad_time(x, T)
    Tc = _choose_special_time_block(F, T_eff, itemsize, block_budget_bytes)
    nt = T_eff // Tc

    out = pl.pallas_call(
        functools.partial(_special_fused_kernel, eps=eps, inv_count=inv_count),
        out_shape=jax.ShapeDtypeStruct((F, B, T_eff), dtype),
        grid_spec=pltpu.PrefetchScalarGridSpec(
            num_scalar_prefetch=0,
            grid=(B, 2, nt),
            in_specs=[pl.BlockSpec((None, F, Tc), lambda b, p, t: (b, 0, t))],
            out_specs=pl.BlockSpec((F, None, Tc), lambda b, p, t: (0, b, t * p)),
            scratch_shapes=[pltpu.VMEM((1, 1), jnp.float32)],
        ),
        compiler_params=_compiler_params(("parallel", "arbitrary", "arbitrary")),
    )(x_work)
    out = out if T_eff == T else out[:, :, :T]
    return out.reshape(F * B, 1, T)


@functools.partial(
    jax.jit,
    static_argnames=("is_special", "eps", "max_resident_bytes", "block_budget_bytes"))
def norm_layer_forward(x, *, is_special=False, eps=1e-5,
                       max_resident_bytes=_DEFAULT_RESIDENT_BYTES,
                       block_budget_bytes=_DEFAULT_BLOCK_BYTES):
    """Pallas implementation of NormLayer.forward.  x: [B, F, T]; dtype preserved."""
    if is_special:
        return _forward_special(x, eps, max_resident_bytes, block_budget_bytes)
    return _forward_freq(x, eps, max_resident_bytes, block_budget_bytes)


# =============================================================================
# Pure-JAX reference (exact PyTorch NormLayer semantics) for verification
# =============================================================================
def norm_layer_reference(x, *, is_special=False, eps=1e-5):
    xf = x.astype(jnp.float32)
    B, F, T = xf.shape
    if not is_special:
        y = jnp.transpose(xf, (1, 0, 2))                 # [F, B, T]
        m = jnp.mean(y, axis=(1, 2), keepdims=True)      # [F, 1, 1]
        y = y / (m + eps)
        return jnp.transpose(y, (1, 0, 2))               # [B, F, T]
    m = jnp.mean(xf, axis=(1, 2), keepdims=True)         # [B, 1, 1]
    y = xf / (m + eps)                                   # [B, F, T]
    y = jnp.transpose(y, (1, 0, 2))                      # [F, B, T]
    return y.reshape(F * B, 1, T)                        # [F*B, 1, T]


# =============================================================================
if __name__ == "__main__":
    def _check(name, out, ref, rtol=1e-5, atol=1e-5):
        assert out.shape == ref.shape, (name, out.shape, ref.shape)
        o = out.astype(jnp.float32)
        assert bool(jnp.all(jnp.isfinite(o))), name
        assert bool(jnp.allclose(o, ref, rtol=rtol, atol=atol)), name

    key = jax.random.PRNGKey(0)
    k1, k2 = jax.random.split(key)

    # --- small shapes -> fully VMEM-resident fast paths -----------------------
    B, F, T = 2, 32, 16
    # Magnitude-spectrogram-like positive inputs keep the means away from zero.
    x = jax.random.uniform(k1, (B, F, T), jnp.float32, 0.1, 1.0)

    out_std = jax.block_until_ready(norm_layer_forward(x, is_special=False))
    out_spc = jax.block_until_ready(norm_layer_forward(x, is_special=True))
    assert out_std.shape == (B, F, T) and out_std.dtype == x.dtype
    assert out_spc.shape == (F * B, 1, T) and out_spc.dtype == x.dtype
    _check("freq_fast", out_std, norm_layer_reference(x, is_special=False))
    _check("special_fast", out_spc, norm_layer_reference(x, is_special=True))

    # bf16 input stays bf16 end to end (no wrapper up-cast pass over HBM).
    xb = x.astype(jnp.bfloat16)
    out_b = jax.block_until_ready(norm_layer_forward(xb, is_special=False))
    assert out_b.dtype == jnp.bfloat16
    _check("freq_fast_bf16", out_b, norm_layer_reference(xb, is_special=False),
           rtol=1e-2, atol=1e-2)

    # --- force the fused streaming (two-phase) path on a modest shape ---------
    B2, F2, T2 = 2, 16, 512
    x2 = jax.random.uniform(k2, (B2, F2, T2), jnp.float32, 0.1, 1.0)
    out2_std = jax.block_until_ready(
        norm_layer_forward(x2, is_special=False,
                           max_resident_bytes=0, block_budget_bytes=8 * 1024))
    out2_spc = jax.block_until_ready(
        norm_layer_forward(x2, is_special=True,
                           max_resident_bytes=0, block_budget_bytes=8 * 1024))
    assert out2_std.shape == (B2, F2, T2)
    assert out2_spc.shape == (F2 * B2, 1, T2)
    _check("freq_streaming", out2_std, norm_layer_reference(x2, is_special=False))
    _check("special_streaming", out2_spc, norm_layer_reference(x2, is_special=True))

    print("KERNEL_OK")
</pallas_src>

<mosaic_0001>
module attributes {stable_mosaic.version = 11 : i64} {
  func.func @_freq_fast_kernel(%arg0: i32, %arg1: memref<2x32x16xf32, #tpu.memory_space<vmem>>, %arg2: memref<2x32x16xf32, #tpu.memory_space<vmem>>) attributes {dimension_semantics = [#tpu.dimension_semantics<arbitrary>], iteration_bounds = array<i64: 1>, scalar_prefetch = 0 : i64, scratch_operands = 0 : i64, tpu.core_type = #tpu.core_type<tc>, window_params = [{pipeline_mode = #tpu.pipeline_mode<synchronous>, transform_indices = @transform_0, window_bounds = array<i64: 2, 32, 16>}, {pipeline_mode = #tpu.pipeline_mode<synchronous>, transform_indices = @transform_1, window_bounds = array<i64: 2, 32, 16>}]} {
    %c0 = arith.constant 0 : index
    %c0_0 = arith.constant 0 : index
    %c0_1 = arith.constant 0 : index
    %0 = vector.load %arg1[%c0, %c0_0, %c0_1] : memref<2x32x16xf32, #tpu.memory_space<vmem>>, vector<2x32x16xf32>
    %cst = arith.constant dense<0.000000e+00> : vector<32x16xf32>
    %1 = vector.multi_reduction <add>, %0, %cst [0] : vector<2x32x16xf32> to vector<32x16xf32>
    %cst_2 = arith.constant dense<0.000000e+00> : vector<32xf32>
    %2 = vector.multi_reduction <add>, %1, %cst_2 [1] : vector<32x16xf32> to vector<32xf32>
    %3 = vector.shape_cast %2 : vector<32xf32> to vector<32x1xf32>
    %cst_3 = arith.constant 3.125000e-02 : f32
    %4 = vector.broadcast %cst_3 : f32 to vector<32x1xf32>
    %5 = arith.mulf %3, %4 : vector<32x1xf32>
    %cst_4 = arith.constant 9.99999974E-6 : f32
    %6 = vector.broadcast %cst_4 : f32 to vector<32x1xf32>
    %7 = arith.addf %5, %6 : vector<32x1xf32>
    %cst_5 = arith.constant 1.000000e+00 : f32
    %8 = vector.broadcast %cst_5 : f32 to vector<32x1xf32>
    %9 = arith.divf %8, %7 : vector<32x1xf32>
    %10 = vector.shape_cast %9 : vector<32x1xf32> to vector<1x32x1xf32>
    %11 = vector.broadcast %10 : vector<1x32x1xf32> to vector<2x32x16xf32>
    %12 = arith.mulf %0, %11 : vector<2x32x16xf32>
    %c0_6 = arith.constant 0 : index
    %c0_7 = arith.constant 0 : index
    %c0_8 = arith.constant 0 : index
    %13 = vector.load %arg2[%c0_6, %c0_7, %c0_8] : memref<2x32x16xf32, #tpu.memory_space<vmem>>, vector<2x32x16xf32>
    tpu.vector_store %arg2[%c0_6, %c0_7, %c0_8], %12 {strides = array<i32>} : memref<2x32x16xf32, #tpu.memory_space<vmem>>, vector<2x32x16xf32>,
    return
  }
  func.func @transform_0(%arg0: i32) -> (i32, i32, i32) {
    %c0_i32 = arith.constant 0 : i32
    %c0_i32_0 = arith.constant 0 : i32
    %c0_i32_1 = arith.constant 0 : i32
    %c0_i32_2 = arith.constant 0 : i32
    return %c0_i32, %c0_i32_0, %c0_i32_1 : i32, i32, i32
  }
  func.func @transform_1(%arg0: i32) -> (i32, i32, i32) {
    %c0_i32 = arith.constant 0 : i32
    %c0_i32_0 = arith.constant 0 : i32
    %c0_i32_1 = arith.constant 0 : i32
    %c0_i32_2 = arith.constant 0 : i32
    return %c0_i32, %c0_i32_0, %c0_i32_1 : i32, i32, i32
  }
}

</mosaic_0001>

<llo_original>
// kernel: norm_layer_forward.1
$region0: #{norm_layer_forward.1}
  #allocation0 [shape = 'u32[]', space=smem, size = 0x4, offset = 0x4, fixed_abs, tag = 'smem constant byte address 0x4 - core index']
  #allocation1 [shape = 'u32[144,128]{1,0:T(1,128)}', space=vmem, size = 0x12000, scoped, tag = 'internal scratch']
  %s0 = inlined_call_operand.vmem [shape: f32[2,32,16], index: 0, kind: input, shape index: {}]
  %s1 = inlined_call_operand.vmem [shape: f32[2,32,16], index: 1, kind: output, shape index: {}]
  %s2 = sld [smem:[#allocation0]]
  $region14: #{norm_layer_forward.1} parent=0
    _
  %s4 = ssub.s32 1, %s2
  %s5 = scalar_select 0, %s4, %s2
  // Predicated region
  $region2: #{norm_layer_forward.1} parent=0 // pred_check
    _
  $region3: #{norm_layer_forward.1} parent=0 // pred_check_branch
    %7 = sbr.rel (0) target = $region5
  $region4: #{norm_layer_forward.1} parent=0 // pred_region
    _
  $region5: #{norm_layer_forward.1} parent=0 // pred_fallthru
    _
  %v8 = vld [vmem:[%s0] sm:$0xff]
  %v9 = vld [vmem:[%s0 + $0x8] sm:$0xff]
  %v10 = vld [vmem:[%s0 + $0x10] sm:$0xff]
  %v11 = vld [vmem:[%s0 + $0x18] sm:$0xff]
  %v12 = vld [vmem:[%s0 + $0x20] sm:$0xff]
  %v13 = vld [vmem:[%s0 + $0x28] sm:$0xff]
  %v14 = vld [vmem:[%s0 + $0x30] sm:$0xff]
  %v15 = vld [vmem:[%s0 + $0x38] sm:$0xff]
  %vm16 = vcmask 130048
  %v17 = vsel %vm16, %v8, 0.0
  %v18 = vsel %vm16, %v12, 0.0
  %v19 = vadd.f32 %v17, %v18
  %v20 = vsel %vm16, %v9, 0.0
  %v21 = vsel %vm16, %v13, 0.0
  %v22 = vadd.f32 %v20, %v21
  %v23 = vsel %vm16, %v10, 0.0
  %v24 = vsel %vm16, %v14, 0.0
  %v25 = vadd.f32 %v23, %v24
  %v26 = vsel %vm16, %v11, 0.0
  %v27 = vsel %vm16, %v15, 0.0
  %v28 = vadd.f32 %v26, %v27
  %v29 = vsel %vm16, %v19, 0.0
  %30 = vadd.xlane.f32.xlu0 %v29
  %v31 = vpop.xlane.xlu0 %30
  %v32 = vsel %vm16, %v22, 0.0
  %33 = vadd.xlane.f32.xlu0 %v32
  %v34 = vpop.xlane.xlu0 %33
  %v35 = vsel %vm16, %v25, 0.0
  %36 = vadd.xlane.f32.xlu0 %v35
  %v37 = vpop.xlane.xlu0 %36
  %v38 = vsel %vm16, %v28, 0.0
  %39 = vadd.xlane.f32.xlu0 %v38
  %v40 = vpop.xlane.xlu0 %39
  %v41 = vmul.f32 %v31, 0.03125
  %v42 = vmul.f32 %v34, 0.03125
  %v43 = vmul.f32 %v37, 0.03125
  %v44 = vmul.f32 %v40, 0.03125
  %v45 = vadd.f32 %v41, 1e-05
  %v46 = vadd.f32 %v42, 1e-05
  %v47 = vadd.f32 %v43, 1e-05
  %v48 = vadd.f32 %v44, 1e-05
  %v49 = vrcp.pop %v45
  %v50 = vmul.f32 1.0, %v49
  %v51 = vrcp.pop %v46
  %v52 = vmul.f32 1.0, %v51
  %v53 = vrcp.pop %v47
  %v54 = vmul.f32 1.0, %v53
  %v55 = vrcp.pop %v48
  %v56 = vmul.f32 1.0, %v55
  %v57 = vmul.f32 %v8, %v50
  %v58 = vmul.f32 %v9, %v52
  %v59 = vmul.f32 %v10, %v54
  %v60 = vmul.f32 %v11, %v56
  %v61 = vmul.f32 %v12, %v50
  %v62 = vmul.f32 %v13, %v52
  %v63 = vmul.f32 %v14, %v54
  %v64 = vmul.f32 %v15, %v56
  %65 = vst.msk [vmem:[%s1] sm:$0xff] %vm16, %v57
  %66 = vst.msk [vmem:[%s1 + $0x8] sm:$0xff] %vm16, %v58
  %67 = vst.msk [vmem:[%s1 + $0x10] sm:$0xff] %vm16, %v59
  %68 = vst.msk [vmem:[%s1 + $0x18] sm:$0xff] %vm16, %v60
  %69 = vst.msk [vmem:[%s1 + $0x20] sm:$0xff] %vm16, %v61
  %70 = vst.msk [vmem:[%s1 + $0x28] sm:$0xff] %vm16, %v62
  %71 = vst.msk [vmem:[%s1 + $0x30] sm:$0xff] %vm16, %v63
  %72 = vst.msk [vmem:[%s1 + $0x38] sm:$0xff] %vm16, %v64
  // Predicated region
  $region6: #{norm_layer_forward.1} parent=0 // pred_check
    _
  $region7: #{norm_layer_forward.1} parent=0 // pred_check_branch
    %74 = sbr.rel (0) target = $region9
  $region8: #{norm_layer_forward.1} parent=0 // pred_region
    _
  $region9: #{norm_layer_forward.1} parent=0 // pred_fallthru
    _
  // Predicated region
  $region10: #{norm_layer_forward.1} parent=0 // pred_check
    _
  $region11: #{norm_layer_forward.1} parent=0 // pred_check_branch
    %76 = sbr.rel (0) target = $region13
  $region12: #{norm_layer_forward.1} parent=0 // pred_region
    _
  $region13: #{norm_layer_forward.1} parent=0 // pred_fallthru
    _

</llo_original>
